<compile_context>
chip_gen: v7x
topology: tpu7x:2x2x1
jax: 0.10.0
libtpu: 0.0.40
codegen_flags: <defaults>
</compile_context>

<pallas_src>
import functools

import jax
import jax.numpy as jnp
from jax import lax
from jax.experimental import pallas as pl
from jax.experimental.pallas import tpu as pltpu


def _round_up(v, m):
    return ((v + m - 1) // m) * m


def _mhiq_kernel(x_ref, mask_ref, w1_ref, g_ref, b_ref, w2_ref, b2_ref,
                 emb_ref, logembt_ref, z_ref, q_ref, rloss_ref,
                 *, z_dims, h_real, ln_eps):
    # ---- encoder: Linear(no bias) -> LayerNorm -> ReLU -> Linear ----
    x = x_ref[...]                                                     # (TM, Cin_p)
    h = jnp.dot(x, w1_ref[...], preferred_element_type=jnp.float32)   # (TM, H_p)
    hp = h.shape[-1]
    h_valid = lax.broadcasted_iota(jnp.int32, (1, hp), 1) < h_real
    inv_h = 1.0 / float(h_real)
    mu = jnp.sum(h, axis=-1, keepdims=True) * inv_h         # pad cols of h are exactly 0
    diff = jnp.where(h_valid, h - mu, 0.0)                  # mask pad cols out of the stats
    var = jnp.sum(diff * diff, axis=-1, keepdims=True) * inv_h
    hn = diff * lax.rsqrt(var + ln_eps) * g_ref[...] + b_ref[...]
    hr = jnp.maximum(hn, 0.0)
    z = jnp.dot(hr, w2_ref[...], preferred_element_type=jnp.float32) + b2_ref[...]  # (TM, D_p)
    z_ref[...] = z

    # ---- per-head log_softmax via masked full-slab reductions (no sub-lane slices) ----
    dp = z.shape[-1]
    col = lax.broadcasted_iota(jnp.int32, (1, dp), 1)
    m_pf = jnp.zeros_like(z)
    head_stats = []
    start = 0
    for d in z_dims:
        hm = (col >= start) & (col < start + d)             # static segment mask (1, D_p)
        mh = jnp.max(jnp.where(hm, z, -jnp.inf), axis=-1, keepdims=True)
        m_pf = jnp.where(hm, mh, m_pf)
        head_stats.append((hm, mh))
        start += d
    e = jnp.exp(z - m_pf)                                   # single (TM, D_p) transcendental
    inv_s_pf = jnp.zeros_like(z)
    lse_pf = jnp.zeros_like(z)
    for hm, mh in head_stats:
        sh = jnp.sum(jnp.where(hm, e, 0.0), axis=-1, keepdims=True)
        inv_s_pf = jnp.where(hm, 1.0 / sh, inv_s_pf)
        lse_pf = jnp.where(hm, mh + jnp.log(sh), lse_pf)
    exp_p = e * inv_s_pf                                    # == exp(log_softmax); 0 on pad lanes
    p = z - lse_pf

    # ---- KL divergence to every codebook entry: KL(n,m) = self_term - cross ----
    self_term = jnp.sum(exp_p * p, axis=-1, keepdims=True)              # (TM, 1)
    cross = jnp.dot(exp_p, logembt_ref[...],
                    preferred_element_type=jnp.float32)                 # (TM, M_p)
    div = self_term - cross

    # ---- argmin (first minimum) + one-hot gather of the codebook ----
    minval = jnp.min(div, axis=-1, keepdims=True)
    mcol = lax.broadcasted_iota(jnp.int32, div.shape, 1)
    idx = jnp.min(jnp.where(div == minval, mcol, div.shape[-1]),
                  axis=-1, keepdims=True)                               # (TM, 1)
    onehot = (mcol == idx).astype(jnp.float32)                          # (TM, M_p)
    quant = jnp.dot(onehot, emb_ref[...], preferred_element_type=jnp.float32)  # (TM, D_p)

    # straight-through forward value == quant (ST identity belongs in a custom_vjp)
    q_ref[...] = quant

    # per-row commitment term: sum_d exp_p*(p - log emb[idx]) == div[n, idx] == minval
    rloss_ref[...] = minval * mask_ref[...]


def multi_head_info_quantizer(x, masks, params, *, z_dims, commitment_cost=0.25,
                              ln_eps=1e-5, tile_rows=512):
    """x: (B, T, in_channels) float32, masks: (B, T) float32 or None."""
    B, T, Cin = x.shape
    H = params["w1"].shape[1]
    M, D = params["embedding"].shape
    assert D == sum(z_dims)
    N = B * T

    TM = tile_rows if N >= tile_rows else _round_up(N, 8)
    N_p = _round_up(N, TM)
    Cin_p = _round_up(Cin, 128)
    H_p = _round_up(H, 128)
    D_p = _round_up(D, 128)
    M_p = _round_up(M, 128)

    f32 = jnp.float32
    x_flat = x.reshape(N, Cin).astype(f32)
    if masks is None:
        mask_flat = jnp.ones((N, 1), f32)
    else:
        mask_flat = masks.reshape(N, 1).astype(f32)

    # lane-dense padding (zeros everywhere except the codebook, padded with 1.0)
    x_pd = jnp.pad(x_flat, ((0, N_p - N), (0, Cin_p - Cin)))
    mask_pd = jnp.pad(mask_flat, ((0, N_p - N), (0, 0)))
    w1_pd = jnp.pad(params["w1"].astype(f32), ((0, Cin_p - Cin), (0, H_p - H)))
    g_pd = jnp.pad(params["ln_gamma"].astype(f32), ((0, 0), (0, H_p - H)))
    b_pd = jnp.pad(params["ln_beta"].astype(f32), ((0, 0), (0, H_p - H)))
    w2_pd = jnp.pad(params["w2"].astype(f32), ((0, H_p - H), (0, D_p - D)))
    b2_pd = jnp.pad(params["b2"].astype(f32), ((0, 0), (0, D_p - D)))
    emb = params["embedding"].astype(f32)
    emb_pd = jnp.pad(emb, ((0, M_p - M), (0, D_p - D)), constant_values=1.0)
    # hoisted log(codebook); padded feature cols -> 0 (multiplied by exp_p == 0),
    # padded codebook rows -> -1e30 so they can never win the argmin.
    log_emb = jnp.log(emb)
    log_emb = jnp.pad(log_emb, ((0, 0), (0, D_p - D)))
    log_emb = jnp.pad(log_emb, ((0, M_p - M), (0, 0)), constant_values=-1e30)
    log_emb_t = log_emb.T                                   # (D_p, M_p)

    kernel = functools.partial(
        _mhiq_kernel,
        z_dims=tuple(int(d) for d in z_dims),
        h_real=int(H),
        ln_eps=float(ln_eps),
    )

    grid = (N_p // TM,)
    row_spec = lambda bs: pl.BlockSpec(bs, lambda i: (i, 0))   # token-tiled arrays
    res_spec = lambda bs: pl.BlockSpec(bs, lambda i: (0, 0))   # resident weights

    # rough per-grid-step VMEM footprint (f32, double-buffered I/O) -> scoped-VMEM hint
    tile_io = TM * (Cin_p + 1 + 2 * D_p + 1)
    resident = Cin_p * H_p + 2 * H_p + H_p * D_p + D_p + 2 * M_p * D_p
    scratch = TM * (H_p + 5 * D_p + 3 * M_p)
    vmem_est = 4 * (2 * tile_io + 2 * resident + scratch)
    vmem_limit = int(min(max(2 * vmem_est, 16 * 2 ** 20), 48 * 2 ** 20))

    cost = pl.CostEstimate(
        flops=2 * N_p * (Cin_p * H_p + H_p * D_p + 2 * D_p * M_p),
        transcendentals=N_p * (D_p + 2 * len(z_dims) + 1),
        bytes_accessed=4 * (N_p * (Cin_p + 2 * D_p + 2)
                            + Cin_p * H_p + H_p * D_p + 2 * M_p * D_p
                            + 3 * H_p + D_p),
    )

    z_pd, q_pd, row_loss = pl.pallas_call(
        kernel,
        out_shape=(jax.ShapeDtypeStruct((N_p, D_p), f32),    # z (padded)
                   jax.ShapeDtypeStruct((N_p, D_p), f32),    # q (padded)
                   jax.ShapeDtypeStruct((N_p, 1), f32)),     # per-row masked KL
        grid=grid,
        in_specs=[
            row_spec((TM, Cin_p)),        # x
            row_spec((TM, 1)),            # mask
            res_spec((Cin_p, H_p)),       # w1
            res_spec((1, H_p)),           # LayerNorm gamma
            res_spec((1, H_p)),           # LayerNorm beta
            res_spec((H_p, D_p)),         # w2
            res_spec((1, D_p)),           # b2
            res_spec((M_p, D_p)),         # codebook
            res_spec((D_p, M_p)),         # log(codebook)^T
        ],
        out_specs=(
            row_spec((TM, D_p)),
            row_spec((TM, D_p)),
            row_spec((TM, 1)),
        ),
        compiler_params=pltpu.CompilerParams(
            dimension_semantics=("parallel",),
            vmem_limit_bytes=vmem_limit),
        cost_estimate=cost,
    )(x_pd, mask_pd, w1_pd, g_pd, b_pd, w2_pd, b2_pd, emb_pd, log_emb_t)

    z = z_pd[:N, :D].reshape(B, T, D)
    q = q_pd[:N, :D].reshape(B, T, D)
    loss = commitment_cost * jnp.sum(row_loss[:N, 0]) / float(B)
    return z, q, loss


def reference(x, masks, params, *, z_dims, commitment_cost=0.25, ln_eps=1e-5):
    """Plain-JAX mirror of the PyTorch forward (for verification)."""
    B, T, _ = x.shape
    h = x @ params["w1"]
    mu = h.mean(-1, keepdims=True)
    var = ((h - mu) ** 2).mean(-1, keepdims=True)
    hn = (h - mu) * lax.rsqrt(var + ln_eps) * params["ln_gamma"] + params["ln_beta"]
    z = jnp.maximum(hn, 0.0) @ params["w2"] + params["b2"]
    chunks, s = [], 0
    for d in z_dims:
        chunks.append(jax.nn.log_softmax(z[..., s:s + d], axis=-1))
        s += d
    p = jnp.concatenate(chunks, axis=-1)
    emb = params["embedding"]
    D = emb.shape[1]
    p_flat = p.reshape(-1, D)
    kl = jnp.exp(p_flat)[:, None, :] * (p_flat[:, None, :] - jnp.log(emb)[None])
    div = kl.sum(-1)
    idx = jnp.argmin(div, axis=-1)
    quant = emb[idx].reshape(p.shape)
    row_kl = (jnp.exp(p) * (p - jnp.log(quant))).sum(-1)          # (B, T)
    m = jnp.ones((B, T)) if masks is None else masks
    loss = commitment_cost * (row_kl * m).mean(0).sum()
    q = p + (quant - p)
    return z, q, loss


def init_params(key, in_channels, channels, n_embeddings, z_dims):
    D = sum(z_dims)
    k1, k2, k3, k4 = jax.random.split(key, 4)
    w1 = jax.random.normal(k1, (in_channels, channels), jnp.float32) * 0.1
    w2 = jax.random.normal(k2, (channels, D), jnp.float32) * 0.1
    b2 = jax.random.normal(k3, (1, D), jnp.float32) * 0.01
    ln_gamma = jnp.ones((1, channels), jnp.float32)
    ln_beta = jnp.zeros((1, channels), jnp.float32)
    # codebook: per-head Dirichlet(alpha=100) blocks concatenated along the feature dim
    emb_blocks = []
    keys = jax.random.split(k4, len(z_dims))
    for kd, zd in zip(keys, z_dims):
        emb_blocks.append(
            jax.random.dirichlet(kd, jnp.full((zd,), 100.0, jnp.float32),
                                 shape=(n_embeddings,)))
    embedding = jnp.concatenate(emb_blocks, axis=-1).astype(jnp.float32)
    return {"w1": w1, "w2": w2, "b2": b2, "ln_gamma": ln_gamma,
            "ln_beta": ln_beta, "embedding": embedding}


if __name__ == "__main__":
    B, T = 2, 8
    in_channels, channels = 32, 32
    z_dims = (8, 8)
    n_embeddings = 16

    key = jax.random.PRNGKey(0)
    kx, km, kp = jax.random.split(key, 3)
    x = jax.random.normal(kx, (B, T, in_channels), jnp.float32)
    masks = jnp.ones((B, T), jnp.float32).at[1, 6:].set(0.0)
    params = init_params(kp, in_channels, channels, n_embeddings, z_dims)

    z, q, loss = multi_head_info_quantizer(x, masks, params, z_dims=z_dims)
    jax.block_until_ready((z, q, loss))

    z_ref, q_ref, loss_ref = reference(x, masks, params, z_dims=z_dims)
    assert jnp.allclose(z, z_ref, atol=1e-4, rtol=1e-4), "z mismatch"
    assert jnp.allclose(q, q_ref, atol=1e-4, rtol=1e-4), "q mismatch"
    assert jnp.allclose(loss, loss_ref, atol=1e-4, rtol=1e-4), "loss mismatch"

    print("KERNEL_OK")
</pallas_src>

<mosaic_0001>
module attributes {stable_mosaic.version = 11 : i64} {
  func.func @_mhiq_kernel(%arg0: i32, %arg1: memref<16x128xf32, #tpu.memory_space<vmem>>, %arg2: memref<16x1xf32, #tpu.memory_space<vmem>>, %arg3: memref<128x128xf32, #tpu.memory_space<vmem>>, %arg4: memref<1x128xf32, #tpu.memory_space<vmem>>, %arg5: memref<1x128xf32, #tpu.memory_space<vmem>>, %arg6: memref<128x128xf32, #tpu.memory_space<vmem>>, %arg7: memref<1x128xf32, #tpu.memory_space<vmem>>, %arg8: memref<128x128xf32, #tpu.memory_space<vmem>>, %arg9: memref<128x128xf32, #tpu.memory_space<vmem>>, %arg10: memref<16x128xf32, #tpu.memory_space<vmem>>, %arg11: memref<16x128xf32, #tpu.memory_space<vmem>>, %arg12: memref<16x1xf32, #tpu.memory_space<vmem>>) attributes {dimension_semantics = [#tpu.dimension_semantics<parallel>], iteration_bounds = array<i64: 1>, scalar_prefetch = 0 : i64, scratch_operands = 0 : i64, tpu.core_type = #tpu.core_type<tc>, window_params = [{transform_indices = @transform_0, window_bounds = array<i64: 16, 128>}, {transform_indices = @transform_1, window_bounds = array<i64: 16, 1>}, {pipeline_mode = #tpu.pipeline_mode<synchronous>, transform_indices = @transform_2, window_bounds = array<i64: 128, 128>}, {pipeline_mode = #tpu.pipeline_mode<synchronous>, transform_indices = @transform_3, window_bounds = array<i64: 1, 128>}, {pipeline_mode = #tpu.pipeline_mode<synchronous>, transform_indices = @transform_4, window_bounds = array<i64: 1, 128>}, {pipeline_mode = #tpu.pipeline_mode<synchronous>, transform_indices = @transform_5, window_bounds = array<i64: 128, 128>}, {pipeline_mode = #tpu.pipeline_mode<synchronous>, transform_indices = @transform_6, window_bounds = array<i64: 1, 128>}, {pipeline_mode = #tpu.pipeline_mode<synchronous>, transform_indices = @transform_7, window_bounds = array<i64: 128, 128>}, {pipeline_mode = #tpu.pipeline_mode<synchronous>, transform_indices = @transform_8, window_bounds = array<i64: 128, 128>}, {transform_indices = @transform_9, window_bounds = array<i64: 16, 128>}, {transform_indices = @transform_10, window_bounds = array<i64: 16, 128>}, {transform_indices = @transform_11, window_bounds = array<i64: 16, 1>}]} {
    %c0 = arith.constant 0 : index
    %c0_0 = arith.constant 0 : index
    %0 = vector.load %arg1[%c0, %c0_0] : memref<16x128xf32, #tpu.memory_space<vmem>>, vector<16x128xf32>
    %c0_1 = arith.constant 0 : index
    %c0_2 = arith.constant 0 : index
    %1 = vector.load %arg3[%c0_1, %c0_2] : memref<128x128xf32, #tpu.memory_space<vmem>>, vector<128x128xf32>
    %cst = arith.constant dense<0.000000e+00> : vector<16x128xf32>
    %2 = tpu.matmul %0, %1, %cst {dimension_numbers = #tpu.dot_dimension_numbers<[1], [0], [0], [1], [0, 0, 1, 1], [], []>} : vector<16x128xf32>, vector<128x128xf32>, vector<16x128xf32> -> vector<16x128xf32>
    %3 = tpu.iota {dimensions = array<i32: 1>} : vector<1x128xi32>
    %c32_i32 = arith.constant 32 : i32
    %4 = vector.broadcast %c32_i32 : i32 to vector<1x128xi32>
    %5 = arith.cmpi slt, %3, %4 : vector<1x128xi32>
    %cst_3 = arith.constant dense<0.000000e+00> : vector<16xf32>
    %6 = vector.multi_reduction <add>, %2, %cst_3 [1] : vector<16x128xf32> to vector<16xf32>
    %7 = vector.shape_cast %6 : vector<16xf32> to vector<16x1xf32>
    %cst_4 = arith.constant 3.125000e-02 : f32
    %8 = vector.broadcast %cst_4 : f32 to vector<16x1xf32>
    %9 = arith.mulf %7, %8 : vector<16x1xf32>
    %10 = vector.broadcast %9 : vector<16x1xf32> to vector<16x128xf32>
    %11 = arith.subf %2, %10 : vector<16x128xf32>
    %cst_5 = arith.constant 0.000000e+00 : f32
    %12 = vector.shape_cast %5 : vector<1x128xi1> to vector<1x128xi1>
    %13 = vector.broadcast %12 : vector<1x128xi1> to vector<16x128xi1>
    %14 = vector.broadcast %cst_5 : f32 to vector<16x128xf32>
    %15 = arith.select %13, %11, %14 : vector<16x128xi1>, vector<16x128xf32>
    %16 = arith.mulf %15, %15 : vector<16x128xf32>
    %cst_6 = arith.constant dense<0.000000e+00> : vector<16xf32>
    %17 = vector.multi_reduction <add>, %16, %cst_6 [1] : vector<16x128xf32> to vector<16xf32>
    %18 = vector.shape_cast %17 : vector<16xf32> to vector<16x1xf32>
    %cst_7 = arith.constant 3.125000e-02 : f32
    %19 = vector.broadcast %cst_7 : f32 to vector<16x1xf32>
    %20 = arith.mulf %18, %19 : vector<16x1xf32>
    %cst_8 = arith.constant 9.99999974E-6 : f32
    %21 = vector.broadcast %cst_8 : f32 to vector<16x1xf32>
    %22 = arith.addf %20, %21 : vector<16x1xf32>
    %23 = math.rsqrt %22 : vector<16x1xf32>
    %24 = vector.broadcast %23 : vector<16x1xf32> to vector<16x128xf32>
    %25 = arith.mulf %15, %24 : vector<16x128xf32>
    %c0_9 = arith.constant 0 : index
    %c0_10 = arith.constant 0 : index
    %26 = vector.load %arg4[%c0_9, %c0_10] : memref<1x128xf32, #tpu.memory_space<vmem>>, vector<1x128xf32>
    %27 = vector.broadcast %26 : vector<1x128xf32> to vector<16x128xf32>
    %28 = arith.mulf %25, %27 : vector<16x128xf32>
    %c0_11 = arith.constant 0 : index
    %c0_12 = arith.constant 0 : index
    %29 = vector.load %arg5[%c0_11, %c0_12] : memref<1x128xf32, #tpu.memory_space<vmem>>, vector<1x128xf32>
    %30 = vector.broadcast %29 : vector<1x128xf32> to vector<16x128xf32>
    %31 = arith.addf %28, %30 : vector<16x128xf32>
    %cst_13 = arith.constant 0.000000e+00 : f32
    %32 = vector.broadcast %cst_13 : f32 to vector<16x128xf32>
    %33 = arith.maximumf %31, %32 : vector<16x128xf32>
    %c0_14 = arith.constant 0 : index
    %c0_15 = arith.constant 0 : index
    %34 = vector.load %arg6[%c0_14, %c0_15] : memref<128x128xf32, #tpu.memory_space<vmem>>, vector<128x128xf32>
    %cst_16 = arith.constant dense<0.000000e+00> : vector<16x128xf32>
    %35 = tpu.matmul %33, %34, %cst_16 {dimension_numbers = #tpu.dot_dimension_numbers<[1], [0], [0], [1], [0, 0, 1, 1], [], []>} : vector<16x128xf32>, vector<128x128xf32>, vector<16x128xf32> -> vector<16x128xf32>
    %c0_17 = arith.constant 0 : index
    %c0_18 = arith.constant 0 : index
    %36 = vector.load %arg7[%c0_17, %c0_18] : memref<1x128xf32, #tpu.memory_space<vmem>>, vector<1x128xf32>
    %37 = vector.broadcast %36 : vector<1x128xf32> to vector<16x128xf32>
    %38 = arith.addf %35, %37 : vector<16x128xf32>
    %c0_19 = arith.constant 0 : index
    %c0_20 = arith.constant 0 : index
    %39 = vector.load %arg10[%c0_19, %c0_20] : memref<16x128xf32, #tpu.memory_space<vmem>>, vector<16x128xf32>
    tpu.vector_store %arg10[%c0_19, %c0_20], %38 {strides = array<i32>} : memref<16x128xf32, #tpu.memory_space<vmem>>, vector<16x128xf32>,
    %40 = tpu.iota {dimensions = array<i32: 1>} : vector<1x128xi32>
    %cst_21 = arith.constant 0.000000e+00 : f32
    %41 = vector.broadcast %cst_21 : f32 to vector<16x128xf32>
    %c0_i32 = arith.constant 0 : i32
    %42 = vector.broadcast %c0_i32 : i32 to vector<1x128xi32>
    %43 = arith.cmpi sge, %40, %42 : vector<1x128xi32>
    %c8_i32 = arith.constant 8 : i32
    %44 = vector.broadcast %c8_i32 : i32 to vector<1x128xi32>
    %45 = arith.cmpi slt, %40, %44 : vector<1x128xi32>
    %46 = arith.andi %43, %45 : vector<1x128xi1>
    %cst_22 = arith.constant 0xFF800000 : f32
    %47 = vector.shape_cast %46 : vector<1x128xi1> to vector<1x128xi1>
    %48 = vector.broadcast %47 : vector<1x128xi1> to vector<16x128xi1>
    %49 = vector.broadcast %cst_22 : f32 to vector<16x128xf32>
    %50 = arith.select %48, %38, %49 : vector<16x128xi1>, vector<16x128xf32>
    %cst_23 = arith.constant dense<0xFF800000> : vector<16xf32>
    %51 = vector.multi_reduction <maximumf>, %50, %cst_23 [1] : vector<16x128xf32> to vector<16xf32>
    %52 = vector.shape_cast %51 : vector<16xf32> to vector<16x1xf32>
    %53 = vector.shape_cast %46 : vector<1x128xi1> to vector<1x128xi1>
    %54 = vector.broadcast %53 : vector<1x128xi1> to vector<16x128xi1>
    %55 = vector.shape_cast %52 : vector<16x1xf32> to vector<16x1xf32>
    %56 = vector.broadcast %55 : vector<16x1xf32> to vector<16x128xf32>
    %57 = arith.select %54, %56, %41 : vector<16x128xi1>, vector<16x128xf32>
    %c8_i32_24 = arith.constant 8 : i32
    %58 = vector.broadcast %c8_i32_24 : i32 to vector<1x128xi32>
    %59 = arith.cmpi sge, %40, %58 : vector<1x128xi32>
    %c16_i32 = arith.constant 16 : i32
    %60 = vector.broadcast %c16_i32 : i32 to vector<1x128xi32>
    %61 = arith.cmpi slt, %40, %60 : vector<1x128xi32>
    %62 = arith.andi %59, %61 : vector<1x128xi1>
    %cst_25 = arith.constant 0xFF800000 : f32
    %63 = vector.shape_cast %62 : vector<1x128xi1> to vector<1x128xi1>
    %64 = vector.broadcast %63 : vector<1x128xi1> to vector<16x128xi1>
    %65 = vector.broadcast %cst_25 : f32 to vector<16x128xf32>
    %66 = arith.select %64, %38, %65 : vector<16x128xi1>, vector<16x128xf32>
    %cst_26 = arith.constant dense<0xFF800000> : vector<16xf32>
    %67 = vector.multi_reduction <maximumf>, %66, %cst_26 [1] : vector<16x128xf32> to vector<16xf32>
    %68 = vector.shape_cast %67 : vector<16xf32> to vector<16x1xf32>
    %69 = vector.shape_cast %62 : vector<1x128xi1> to vector<1x128xi1>
    %70 = vector.broadcast %69 : vector<1x128xi1> to vector<16x128xi1>
    %71 = vector.shape_cast %68 : vector<16x1xf32> to vector<16x1xf32>
    %72 = vector.broadcast %71 : vector<16x1xf32> to vector<16x128xf32>
    %73 = arith.select %70, %72, %57 : vector<16x128xi1>, vector<16x128xf32>
    %74 = arith.subf %38, %73 : vector<16x128xf32>
    %75 = math.exp %74 : vector<16x128xf32>
    %cst_27 = arith.constant 0.000000e+00 : f32
    %76 = vector.broadcast %cst_27 : f32 to vector<16x128xf32>
    %cst_28 = arith.constant 0.000000e+00 : f32
    %77 = vector.broadcast %cst_28 : f32 to vector<16x128xf32>
    %cst_29 = arith.constant 0.000000e+00 : f32
    %78 = vector.shape_cast %46 : vector<1x128xi1> to vector<1x128xi1>
    %79 = vector.broadcast %78 : vector<1x128xi1> to vector<16x128xi1>
    %80 = vector.broadcast %cst_29 : f32 to vector<16x128xf32>
    %81 = arith.select %79, %75, %80 : vector<16x128xi1>, vector<16x128xf32>
    %cst_30 = arith.constant dense<0.000000e+00> : vector<16xf32>
    %82 = vector.multi_reduction <add>, %81, %cst_30 [1] : vector<16x128xf32> to vector<16xf32>
    %83 = vector.shape_cast %82 : vector<16xf32> to vector<16x1xf32>
    %cst_31 = arith.constant 1.000000e+00 : f32
    %84 = vector.broadcast %cst_31 : f32 to vector<16x1xf32>
    %85 = arith.divf %84, %83 : vector<16x1xf32>
    %86 = vector.shape_cast %46 : vector<1x128xi1> to vector<1x128xi1>
    %87 = vector.broadcast %86 : vector<1x128xi1> to vector<16x128xi1>
    %88 = vector.shape_cast %85 : vector<16x1xf32> to vector<16x1xf32>
    %89 = vector.broadcast %88 : vector<16x1xf32> to vector<16x128xf32>
    %90 = arith.select %87, %89, %76 : vector<16x128xi1>, vector<16x128xf32>
    %91 = math.log %83 : vector<16x1xf32>
    %92 = arith.addf %52, %91 : vector<16x1xf32>
    %93 = vector.shape_cast %46 : vector<1x128xi1> to vector<1x128xi1>
    %94 = vector.broadcast %93 : vector<1x128xi1> to vector<16x128xi1>
    %95 = vector.shape_cast %92 : vector<16x1xf32> to vector<16x1xf32>
    %96 = vector.broadcast %95 : vector<16x1xf32> to vector<16x128xf32>
    %97 = arith.select %94, %96, %77 : vector<16x128xi1>, vector<16x128xf32>
    %cst_32 = arith.constant 0.000000e+00 : f32
    %98 = vector.shape_cast %62 : vector<1x128xi1> to vector<1x128xi1>
    %99 = vector.broadcast %98 : vector<1x128xi1> to vector<16x128xi1>
    %100 = vector.broadcast %cst_32 : f32 to vector<16x128xf32>
    %101 = arith.select %99, %75, %100 : vector<16x128xi1>, vector<16x128xf32>
    %cst_33 = arith.constant dense<0.000000e+00> : vector<16xf32>
    %102 = vector.multi_reduction <add>, %101, %cst_33 [1] : vector<16x128xf32> to vector<16xf32>
    %103 = vector.shape_cast %102 : vector<16xf32> to vector<16x1xf32>
    %cst_34 = arith.constant 1.000000e+00 : f32
    %104 = vector.broadcast %cst_34 : f32 to vector<16x1xf32>
    %105 = arith.divf %104, %103 : vector<16x1xf32>
    %106 = vector.shape_cast %62 : vector<1x128xi1> to vector<1x128xi1>
    %107 = vector.broadcast %106 : vector<1x128xi1> to vector<16x128xi1>
    %108 = vector.shape_cast %105 : vector<16x1xf32> to vector<16x1xf32>
    %109 = vector.broadcast %108 : vector<16x1xf32> to vector<16x128xf32>
    %110 = arith.select %107, %109, %90 : vector<16x128xi1>, vector<16x128xf32>
    %111 = math.log %103 : vector<16x1xf32>
    %112 = arith.addf %68, %111 : vector<16x1xf32>
    %113 = vector.shape_cast %62 : vector<1x128xi1> to vector<1x128xi1>
    %114 = vector.broadcast %113 : vector<1x128xi1> to vector<16x128xi1>
    %115 = vector.shape_cast %112 : vector<16x1xf32> to vector<16x1xf32>
    %116 = vector.broadcast %115 : vector<16x1xf32> to vector<16x128xf32>
    %117 = arith.select %114, %116, %97 : vector<16x128xi1>, vector<16x128xf32>
    %118 = arith.mulf %75, %110 : vector<16x128xf32>
    %119 = arith.subf %38, %117 : vector<16x128xf32>
    %120 = arith.mulf %118, %119 : vector<16x128xf32>
    %cst_35 = arith.constant dense<0.000000e+00> : vector<16xf32>
    %121 = vector.multi_reduction <add>, %120, %cst_35 [1] : vector<16x128xf32> to vector<16xf32>
    %122 = vector.shape_cast %121 : vector<16xf32> to vector<16x1xf32>
    %c0_36 = arith.constant 0 : index
    %c0_37 = arith.constant 0 : index
    %123 = vector.load %arg9[%c0_36, %c0_37] : memref<128x128xf32, #tpu.memory_space<vmem>>, vector<128x128xf32>
    %cst_38 = arith.constant dense<0.000000e+00> : vector<16x128xf32>
    %124 = tpu.matmul %118, %123, %cst_38 {dimension_numbers = #tpu.dot_dimension_numbers<[1], [0], [0], [1], [0, 0, 1, 1], [], []>} : vector<16x128xf32>, vector<128x128xf32>, vector<16x128xf32> -> vector<16x128xf32>
    %125 = vector.broadcast %122 : vector<16x1xf32> to vector<16x128xf32>
    %126 = arith.subf %125, %124 : vector<16x128xf32>
    %cst_39 = arith.constant dense<0x7F800000> : vector<16xf32>
    %127 = vector.multi_reduction <minimumf>, %126, %cst_39 [1] : vector<16x128xf32> to vector<16xf32>
    %128 = vector.shape_cast %127 : vector<16xf32> to vector<16x1xf32>
    %129 = tpu.iota {dimensions = array<i32: 1>} : vector<16x128xi32>
    %130 = vector.broadcast %128 : vector<16x1xf32> to vector<16x128xf32>
    %131 = arith.cmpf oeq, %126, %130 : vector<16x128xf32>
    %c128_i32 = arith.constant 128 : i32
    %132 = vector.broadcast %c128_i32 : i32 to vector<16x128xi32>
    %133 = arith.select %131, %129, %132 : vector<16x128xi1>, vector<16x128xi32>
    %cst_40 = arith.constant dense<2147483647> : vector<16xi32>
    %134 = vector.multi_reduction <minsi>, %133, %cst_40 [1] : vector<16x128xi32> to vector<16xi32>
    %135 = vector.shape_cast %134 : vector<16xi32> to vector<16x1xi32>
    %136 = vector.broadcast %135 : vector<16x1xi32> to vector<16x128xi32>
    %137 = arith.cmpi eq, %129, %136 : vector<16x128xi32>
    %138 = arith.extui %137 : vector<16x128xi1> to vector<16x128xi32>
    %139 = arith.sitofp %138 : vector<16x128xi32> to vector<16x128xf32>
    %c0_41 = arith.constant 0 : index
    %c0_42 = arith.constant 0 : index
    %140 = vector.load %arg8[%c0_41, %c0_42] : memref<128x128xf32, #tpu.memory_space<vmem>>, vector<128x128xf32>
    %cst_43 = arith.constant dense<0.000000e+00> : vector<16x128xf32>
    %141 = tpu.matmul %139, %140, %cst_43 {dimension_numbers = #tpu.dot_dimension_numbers<[1], [0], [0], [1], [0, 0, 1, 1], [], []>} : vector<16x128xf32>, vector<128x128xf32>, vector<16x128xf32> -> vector<16x128xf32>
    %c0_44 = arith.constant 0 : index
    %c0_45 = arith.constant 0 : index
    %142 = vector.load %arg11[%c0_44, %c0_45] : memref<16x128xf32, #tpu.memory_space<vmem>>, vector<16x128xf32>
    tpu.vector_store %arg11[%c0_44, %c0_45], %141 {strides = array<i32>} : memref<16x128xf32, #tpu.memory_space<vmem>>, vector<16x128xf32>,
    %c0_46 = arith.constant 0 : index
    %c0_47 = arith.constant 0 : index
    %143 = vector.load %arg2[%c0_46, %c0_47] : memref<16x1xf32, #tpu.memory_space<vmem>>, vector<16x1xf32>
    %144 = arith.mulf %128, %143 : vector<16x1xf32>
    %c0_48 = arith.constant 0 : index
    %c0_49 = arith.constant 0 : index
    %145 = vector.load %arg12[%c0_48, %c0_49] : memref<16x1xf32, #tpu.memory_space<vmem>>, vector<16x1xf32>
    tpu.vector_store %arg12[%c0_48, %c0_49], %144 {strides = array<i32>} : memref<16x1xf32, #tpu.memory_space<vmem>>, vector<16x1xf32>,
    return
  }
  func.func @transform_0(%arg0: i32) -> (i32, i32) {
    %c0_i32 = arith.constant 0 : i32
    %c0_i32_0 = arith.constant 0 : i32
    return %arg0, %c0_i32 : i32, i32
  }
  func.func @transform_1(%arg0: i32) -> (i32, i32) {
    %c0_i32 = arith.constant 0 : i32
    %c0_i32_0 = arith.constant 0 : i32
    return %arg0, %c0_i32 : i32, i32
  }
  func.func @transform_2(%arg0: i32) -> (i32, i32) {
    %c0_i32 = arith.constant 0 : i32
    %c0_i32_0 = arith.constant 0 : i32
    %c0_i32_1 = arith.constant 0 : i32
    return %c0_i32, %c0_i32_0 : i32, i32
  }
  func.func @transform_3(%arg0: i32) -> (i32, i32) {
    %c0_i32 = arith.constant 0 : i32
    %c0_i32_0 = arith.constant 0 : i32
    %c0_i32_1 = arith.constant 0 : i32
    return %c0_i32, %c0_i32_0 : i32, i32
  }
  func.func @transform_4(%arg0: i32) -> (i32, i32) {
    %c0_i32 = arith.constant 0 : i32
    %c0_i32_0 = arith.constant 0 : i32
    %c0_i32_1 = arith.constant 0 : i32
    return %c0_i32, %c0_i32_0 : i32, i32
  }
  func.func @transform_5(%arg0: i32) -> (i32, i32) {
    %c0_i32 = arith.constant 0 : i32
    %c0_i32_0 = arith.constant 0 : i32
    %c0_i32_1 = arith.constant 0 : i32
    return %c0_i32, %c0_i32_0 : i32, i32
  }
  func.func @transform_6(%arg0: i32) -> (i32, i32) {
    %c0_i32 = arith.constant 0 : i32
    %c0_i32_0 = arith.constant 0 : i32
    %c0_i32_1 = arith.constant 0 : i32
    return %c0_i32, %c0_i32_0 : i32, i32
  }
  func.func @transform_7(%arg0: i32) -> (i32, i32) {
    %c0_i32 = arith.constant 0 : i32
    %c0_i32_0 = arith.constant 0 : i32
    %c0_i32_1 = arith.constant 0 : i32
    return %c0_i32, %c0_i32_0 : i32, i32
  }
  func.func @transform_8(%arg0: i32) -> (i32, i32) {
    %c0_i32 = arith.constant 0 : i32
    %c0_i32_0 = arith.constant 0 : i32
    %c0_i32_1 = arith.constant 0 : i32
    return %c0_i32, %c0_i32_0 : i32, i32
  }
  func.func @transform_9(%arg0: i32) -> (i32, i32) {
    %c0_i32 = arith.constant 0 : i32
    %c0_i32_0 = arith.constant 0 : i32
    return %arg0, %c0_i32 : i32, i32
  }
  func.func @transform_10(%arg0: i32) -> (i32, i32) {
    %c0_i32 = arith.constant 0 : i32
    %c0_i32_0 = arith.constant 0 : i32
    return %arg0, %c0_i32 : i32, i32
  }
  func.func @transform_11(%arg0: i32) -> (i32, i32) {
    %c0_i32 = arith.constant 0 : i32
    %c0_i32_0 = arith.constant 0 : i32
    return %arg0, %c0_i32 : i32, i32
  }
}

</mosaic_0001>

<llo_original>
// kernel: tpu_custom_call.1
$region0: #{tpu_custom_call.1}
  #allocation0 [shape = 'u32[]', space=smem, size = 0x4, offset = 0x4, fixed_abs, tag = 'smem constant byte address 0x4 - core index']
  #allocation1 [shape = 'u32[144,128]{1,0:T(1,128)}', space=vmem, size = 0x12000, scoped, tag = 'internal scratch']
  %s0 = inlined_call_operand.vmem [shape: f32[16,128], index: 0, kind: input, shape index: {}]
  %s1 = inlined_call_operand.vmem [shape: f32[16,1], index: 1, kind: input, shape index: {}]
  %s2 = inlined_call_operand.hbm [shape: f32[128,128], index: 2, kind: input, shape index: {}]
  %s3 = inlined_call_operand.vmem [shape: f32[1,128], index: 3, kind: input, shape index: {}]
  %s4 = inlined_call_operand.vmem [shape: f32[1,128], index: 4, kind: input, shape index: {}]
  %s5 = inlined_call_operand.hbm [shape: f32[128,128], index: 5, kind: input, shape index: {}]
  %s6 = inlined_call_operand.vmem [shape: f32[1,128], index: 6, kind: input, shape index: {}]
  %s7 = inlined_call_operand.hbm [shape: f32[128,128], index: 7, kind: input, shape index: {}]
  %s8 = inlined_call_operand.hbm [shape: f32[128,128], index: 8, kind: input, shape index: {}]
  %s9 = inlined_call_operand.hbm [shape: f32[16,128], index: 9, kind: output, shape index: {0}]
  %s10 = inlined_call_operand.hbm [shape: f32[16,128], index: 10, kind: output, shape index: {1}]
  %s11 = inlined_call_operand.vmem [shape: f32[16,1], index: 11, kind: output, shape index: {2}]
  %12 = xla_tuple %s9, %s10, %s11
  %s13 = sld [smem:[#allocation0]]
  $region78: #{tpu_custom_call.1} parent=0
    _
  %s15 = ssub.s32 1, %s13
  %s16 = scalar_select 0, %s15, %s13
  $region1: #{tpu_custom_call.1} parent=0
    #allocation2 [shape = 'u8[65536]{0}', space=vmem, size = 0x10000, scoped, tag = 'input window, operand 2, single buffered']
    #allocation3 [shape = 's32[1]{0}', space=sflag, size = 0x4, scoped, tag = 'scoped memory for tpu_custom_call.1']
    #allocation4 [shape = 's32[1]{0}', space=sflag, size = 0x4, scoped, tag = 'scoped memory for tpu_custom_call.1']
    #allocation5 [shape = 'u8[65536]{0}', space=vmem, size = 0x10000, scoped, tag = 'input window, operand 5, single buffered']
    #allocation6 [shape = 's32[1]{0}', space=sflag, size = 0x4, scoped, tag = 'scoped memory for tpu_custom_call.1']
    #allocation7 [shape = 'u8[65536]{0}', space=vmem, size = 0x10000, scoped, tag = 'input window, operand 7, single buffered']
    #allocation8 [shape = 'u8[65536]{0}', space=vmem, size = 0x10000, scoped, tag = 'input window, operand 8, single buffered']
    #allocation9 [shape = 's32[1]{0}', space=sflag, size = 0x4, scoped, tag = 'scoped memory for tpu_custom_call.1']
    #allocation10 [shape = 'u8[8192]{0}', space=vmem, size = 0x2000, scoped, tag = 'output window, operand 0, single buffered']
    #allocation11 [shape = 'u8[8192]{0}', space=vmem, size = 0x2000, scoped, tag = 'output window, operand 1, single buffered']
    #allocation12 [shape = 's32[1]{0}', space=sflag, size = 0x4, scoped, tag = 'scoped memory for tpu_custom_call.1']
    %17 = vsyncpa [#allocation3], 0
    %18 = vsyncpa [#allocation6], 0
    %19 = vsyncpa [#allocation9], 0
    %20 = vsyncpa [#allocation4], 0
    %21 = vsyncpa [#allocation12], 0
    // Predicated region
    $region2: #{tpu_custom_call.1} parent=1 // pred_check
      _
    $region3: #{tpu_custom_call.1} parent=1 // pred_check_branch
      %23 = sbr.rel (0) target = $region5
    $region4: #{tpu_custom_call.1} parent=1 // pred_region
      _
    $region5: #{tpu_custom_call.1} parent=1 // pred_fallthru
      _
    // Predicated region
    $region6: #{tpu_custom_call.1} parent=1 // pred_check
      _
    $region7: #{tpu_custom_call.1} parent=1 // pred_check_branch
      %25 = sbr.rel (0) target = $region9
    $region8: #{tpu_custom_call.1} parent=1 // pred_region
      _
    $region9: #{tpu_custom_call.1} parent=1 // pred_fallthru
      _
    // Predicated region
    $region10: #{tpu_custom_call.1} parent=1 // pred_check
      _
    $region11: #{tpu_custom_call.1} parent=1 // pred_check_branch
      %27 = sbr.rel (0) target = $region13
    $region12: #{tpu_custom_call.1} parent=1 // pred_region
      %s29 = ssub.s32 2048, 2048
      %30 = vsyncadd [#allocation3], %s29
      %s31 = sshll.u32 [#allocation2], 4
      %s32 = int_to_ptr.vmem [resolvable:$true] %s31
      %37 = dma.hbm_to_vmem [thread:$0]  %s2, 2048, %s32, [#allocation3], 128, 128, 8
    $region13: #{tpu_custom_call.1} parent=1 // pred_fallthru
      _
    // Predicated region
    $region14: #{tpu_custom_call.1} parent=1 // pred_check
      _
    $region15: #{tpu_custom_call.1} parent=1 // pred_check_branch
      %39 = sbr.rel (0) target = $region17
    $region16: #{tpu_custom_call.1} parent=1 // pred_region
      _
    $region17: #{tpu_custom_call.1} parent=1 // pred_fallthru
      _
    // Predicated region
    $region18: #{tpu_custom_call.1} parent=1 // pred_check
      _
    $region19: #{tpu_custom_call.1} parent=1 // pred_check_branch
      %41 = sbr.rel (0) target = $region21
    $region20: #{tpu_custom_call.1} parent=1 // pred_region
      _
    $region21: #{tpu_custom_call.1} parent=1 // pred_fallthru
      _
    // Predicated region
    $region22: #{tpu_custom_call.1} parent=1 // pred_check
      _
    $region23: #{tpu_custom_call.1} parent=1 // pred_check_branch
      %43 = sbr.rel (0) target = $region25
    $region24: #{tpu_custom_call.1} parent=1 // pred_region
      %s45 = ssub.s32 2048, 2048
      %46 = vsyncadd [#allocation6], %s45
      %s47 = sshll.u32 [#allocation5], 4
      %s48 = int_to_ptr.vmem [resolvable:$true] %s47
      %53 = dma.hbm_to_vmem [thread:$0]  %s5, 2048, %s48, [#allocation6], 128, 128, 8
    $region25: #{tpu_custom_call.1} parent=1 // pred_fallthru
      _
    // Predicated region
    $region26: #{tpu_custom_call.1} parent=1 // pred_check
      _
    $region27: #{tpu_custom_call.1} parent=1 // pred_check_branch
      %55 = sbr.rel (0) target = $region29
    $region28: #{tpu_custom_call.1} parent=1 // pred_region
      _
    $region29: #{tpu_custom_call.1} parent=1 // pred_fallthru
      _
    // Predicated region
    $region30: #{tpu_custom_call.1} parent=1 // pred_check
      _
    $region31: #{tpu_custom_call.1} parent=1 // pred_check_branch
      %57 = sbr.rel (0) target = $region33
    $region32: #{tpu_custom_call.1} parent=1 // pred_region
      %s59 = ssub.s32 2048, 2048
      %60 = vsyncadd [#allocation6], %s59
      %s61 = sshll.u32 [#allocation7], 4
      %s62 = int_to_ptr.vmem [resolvable:$true] %s61
      %67 = dma.hbm_to_vmem [thread:$0]  %s7, 2048, %s62, [#allocation6], 128, 128, 8
    $region33: #{tpu_custom_call.1} parent=1 // pred_fallthru
      _
    // Predicated region
    $region34: #{tpu_custom_call.1} parent=1 // pred_check
      _
    $region35: #{tpu_custom_call.1} parent=1 // pred_check_branch
      %69 = sbr.rel (0) target = $region37
    $region36: #{tpu_custom_call.1} parent=1 // pred_region
      %s71 = ssub.s32 2048, 2048
      %72 = vsyncadd [#allocation9], %s71
      %s73 = sshll.u32 [#allocation8], 4
      %s74 = int_to_ptr.vmem [resolvable:$true] %s73
      %79 = dma.hbm_to_vmem [thread:$0]  %s8, 2048, %s74, [#allocation9], 128, 128, 8
    $region37: #{tpu_custom_call.1} parent=1 // pred_fallthru
      _
    // Predicated region
    $region38: #{tpu_custom_call.1} parent=1 // pred_check
      _
    $region39: #{tpu_custom_call.1} parent=1 // pred_check_branch
      %81 = sbr.rel (0) target = $region41
    $region40: #{tpu_custom_call.1} parent=1 // pred_region
      %82 = dma.done [#allocation3], 2048
    $region41: #{tpu_custom_call.1} parent=1 // pred_fallthru
      _
    // Predicated region
    $region42: #{tpu_custom_call.1} parent=1 // pred_check
      _
    $region43: #{tpu_custom_call.1} parent=1 // pred_check_branch
      %84 = sbr.rel (0) target = $region45
    $region44: #{tpu_custom_call.1} parent=1 // pred_region
      %85 = dma.done [#allocation6], 2048
    $region45: #{tpu_custom_call.1} parent=1 // pred_fallthru
      _
    // Predicated region
    $region46: #{tpu_custom_call.1} parent=1 // pred_check
      _
    $region47: #{tpu_custom_call.1} parent=1 // pred_check_branch
      %87 = sbr.rel (0) target = $region49
    $region48: #{tpu_custom_call.1} parent=1 // pred_region
      %88 = dma.done [#allocation6], 2048
    $region49: #{tpu_custom_call.1} parent=1 // pred_fallthru
      _
    // Predicated region
    $region50: #{tpu_custom_call.1} parent=1 // pred_check
      _
    $region51: #{tpu_custom_call.1} parent=1 // pred_check_branch
      %90 = sbr.rel (0) target = $region53
    $region52: #{tpu_custom_call.1} parent=1 // pred_region
      %91 = dma.done [#allocation9], 2048
    $region53: #{tpu_custom_call.1} parent=1 // pred_fallthru
      _
    %v92 = vld [vmem:[%s0] sm:$0xff]
    %v93 = vld [vmem:[%s0 + $0x8] sm:$0xff]
    %v94 = vld [vmem:[#allocation2] sm:$0xff]
    %v95 = vld [vmem:[#allocation2 + $0x8] sm:$0xff]
    %v96 = vld [vmem:[#allocation2 + $0x10] sm:$0xff]
    %v97 = vld [vmem:[#allocation2 + $0x18] sm:$0xff]
    %v98 = vld [vmem:[#allocation2 + $0x20] sm:$0xff]
    %v99 = vld [vmem:[#allocation2 + $0x28] sm:$0xff]
    %v100 = vld [vmem:[#allocation2 + $0x30] sm:$0xff]
    %v101 = vld [vmem:[#allocation2 + $0x38] sm:$0xff]
    %v102 = vld [vmem:[#allocation2 + $0x40] sm:$0xff]
    %v103 = vld [vmem:[#allocation2 + $0x48] sm:$0xff]
    %v104 = vld [vmem:[#allocation2 + $0x50] sm:$0xff]
    %v105 = vld [vmem:[#allocation2 + $0x58] sm:$0xff]
    %v106 = vld [vmem:[#allocation2 + $0x60] sm:$0xff]
    %v107 = vld [vmem:[#allocation2 + $0x68] sm:$0xff]
    %v108 = vld [vmem:[#allocation2 + $0x70] sm:$0xff]
    %v109 = vld [vmem:[#allocation2 + $0x78] sm:$0xff]
    %110 = vmatprep.subr.mxu0 0.0
    %111 = vmatpush1.msra.mxu0 %v94
    %112 = vmatprep.subr.mxu0 0.0
    %113 = vmatpush1.msra.mxu0 %v95
    %114 = vmatprep.subr.mxu0 0.0
    %115 = vmatpush1.msra.mxu0 %v96
    %116 = vmatprep.subr.mxu0 0.0
    %117 = vmatpush1.msra.mxu0 %v97
    %118 = vmatprep.subr.mxu0 0.0
    %119 = vmatpush1.msra.mxu0 %v98
    %120 = vmatprep.subr.mxu0 0.0
    %121 = vmatpush1.msra.mxu0 %v99
    %122 = vmatprep.subr.mxu0 0.0
    %123 = vmatpush1.msra.mxu0 %v100
    %124 = vmatprep.subr.mxu0 0.0
    %125 = vmatpush1.msra.mxu0 %v101
    %126 = vmatprep.subr.mxu0 0.0
    %127 = vmatpush1.msra.mxu0 %v102
    %128 = vmatprep.subr.mxu0 0.0
    %129 = vmatpush1.msra.mxu0 %v103
    %130 = vmatprep.subr.mxu0 0.0
    %131 = vmatpush1.msra.mxu0 %v104
    %132 = vmatprep.subr.mxu0 0.0
    %133 = vmatpush1.msra.mxu0 %v105
    %134 = vmatprep.subr.mxu0 0.0
    %135 = vmatpush1.msra.mxu0 %v106
    %136 = vmatprep.subr.mxu0 0.0
    %137 = vmatpush1.msra.mxu0 %v107
    %138 = vmatprep.subr.mxu0 0.0
    %139 = vmatpush1.msra.mxu0 %v108
    %140 = vmatprep.subr.mxu0 0.0
    %141 = vmatpush1.msra.mxu0 %v109
    %142 = vmatprep.subr.mxu0 0.0
    %143 = vmatpush1.msra.mxu0 0.0
    %144 = vmatprep.subr.mxu0 0.0
    %145 = vmatpush1.msra.mxu0 0.0
    %146 = vmatprep.subr.mxu0 0.0
    %147 = vmatpush1.msra.mxu0 0.0
    %148 = vmatprep.subr.mxu0 0.0
    %149 = vmatpush1.msra.mxu0 0.0
    %150 = vmatprep.subr.mxu0 0.0
    %151 = vmatpush1.msra.mxu0 0.0
    %152 = vmatprep.subr.mxu0 0.0
    %153 = vmatpush1.msra.mxu0 0.0
    %154 = vmatprep.subr.mxu0 0.0
    %155 = vmatpush1.msra.mxu0 0.0
    %156 = vmatprep.subr.mxu0 0.0
    %157 = vmatpush1.msra.mxu0 0.0
    %158 = vmatprep.subr.mxu0 0.0
    %159 = vmatpush1.msra.mxu0 0.0
    %160 = vmatprep.subr.mxu0 0.0
    %161 = vmatpush1.msra.mxu0 0.0
    %162 = vmatprep.subr.mxu0 0.0
    %163 = vmatpush1.msra.mxu0 0.0
    %164 = vmatprep.subr.mxu0 0.0
    %165 = vmatpush1.msra.mxu0 0.0
    %166 = vmatprep.subr.mxu0 0.0
    %167 = vmatpush1.msra.mxu0 0.0
    %168 = vmatprep.subr.mxu0 0.0
    %169 = vmatpush1.msra.mxu0 0.0
    %170 = vmatprep.subr.mxu0 0.0
    %171 = vmatpush1.msra.mxu0 0.0
    %172 = vmatprep.subr.mxu0 0.0
    %173 = vmatpush1.msra.mxu0 0.0
    %174 = vmatprep.mubr.f32.mxu0 0.0
    %175 = vmatmul.mubr.f32.gmra.mrb[0].mxu0 %v92
    %v176 = vpop.f32.mrb[0].mxu0
    %v177 = vadd.f32 0.0, %v176
    %v178 = vpop.f32.mrb[0].mxu0
    %179 = vmatprep.mubr.f32.mxu0 0.0
    %180 = vmatmul.mubr.f32.gmra.mrb[0].mxu0 %v93
    %v181 = vpop.f32.mrb[0].mxu0
    %v182 = vadd.f32 0.0, %v181
    %v183 = vpop.f32.mrb[0].mxu0
    %184 = vdwg.mxu0
    %v185 = vlaneseq
    %v186 = vand.u32 %v185, 127
    %vm187 = vcmp.lt.s32.totalorder %v186, 32
    %188 = vadd.xlane.f32.xlu0 %v177
    %v189 = vpop.xlane.xlu0 %188
    %190 = vadd.xlane.f32.xlu0 %v182
    %v191 = vpop.xlane.xlu0 %190
    %v192 = vmul.f32 %v189, 0.03125
    %v193 = vmul.f32 %v191, 0.03125
    %v194 = vsub.f32 %v177, %v192
    %v195 = vsub.f32 %v182, %v193
    %v196 = vsel %vm187, 1, 0
    %vm197 = vcmp.eq.s32.totalorder %v196, 1
    %v198 = vsel %vm197, %v194, 0.0
    %v199 = vsel %vm197, %v195, 0.0
    %v200 = vmul.f32 %v198, %v198
    %v201 = vmul.f32 %v199, %v199
    %202 = vadd.xlane.f32.xlu0 %v200
    %v203 = vpop.xlane.xlu0 %202
    %204 = vadd.xlane.f32.xlu0 %v201
    %v205 = vpop.xlane.xlu0 %204
    %v206 = vmul.f32 %v203, 0.03125
    %v207 = vmul.f32 %v205, 0.03125
    %v208 = vadd.f32 %v206, 1e-05
    %v209 = vadd.f32 %v207, 1e-05
    %v210 = vrsqrt.pop %v208
    %v211 = vrsqrt.pop %v209
    %v212 = vmul.f32 %v198, %v210
    %v213 = vmul.f32 %v199, %v211
    %v214 = vld [vmem:[%s3] sm:$0x1]
    %v216 = vlaneseq
    %v217 = vshrl.u32 %v216, 7
    %v218 = vsub.s32 0, %v217
    %v219 = vrot.slane %v214, %v218
    %v221 = vmul.f32 %v212, %v219
    %v222 = vmul.f32 %v213, %v219
    %v223 = vld [vmem:[%s4] sm:$0x1]
    %v225 = vlaneseq
    %v226 = vshrl.u32 %v225, 7
    %v227 = vsub.s32 0, %v226
    %v228 = vrot.slane %v223, %v227
    %v230 = vadd.f32 %v221, %v228
    %v231 = vadd.f32 %v222, %v228
    %v232 = vmax.f32 %v230, 0.0
    %v233 = vmax.f32 %v231, 0.0
    %v234 = vld [vmem:[#allocation5] sm:$0xff]
    %v235 = vld [vmem:[#allocation5 + $0x8] sm:$0xff]
    %v236 = vld [vmem:[#allocation5 + $0x10] sm:$0xff]
    %v237 = vld [vmem:[#allocation5 + $0x18] sm:$0xff]
    %v238 = vld [vmem:[#allocation5 + $0x20] sm:$0xff]
    %v239 = vld [vmem:[#allocation5 + $0x28] sm:$0xff]
    %v240 = vld [vmem:[#allocation5 + $0x30] sm:$0xff]
    %v241 = vld [vmem:[#allocation5 + $0x38] sm:$0xff]
    %v242 = vld [vmem:[#allocation5 + $0x40] sm:$0xff]
    %v243 = vld [vmem:[#allocation5 + $0x48] sm:$0xff]
    %v244 = vld [vmem:[#allocation5 + $0x50] sm:$0xff]
    %v245 = vld [vmem:[#allocation5 + $0x58] sm:$0xff]
    %v246 = vld [vmem:[#allocation5 + $0x60] sm:$0xff]
    %v247 = vld [vmem:[#allocation5 + $0x68] sm:$0xff]
    %v248 = vld [vmem:[#allocation5 + $0x70] sm:$0xff]
    %v249 = vld [vmem:[#allocation5 + $0x78] sm:$0xff]
    %v250 = vld [vmem:[%s6] sm:$0x1]
    %v252 = vlaneseq
    %v253 = vshrl.u32 %v252, 7
    %v254 = vsub.s32 0, %v253
    %v255 = vrot.slane %v250, %v254
    %257 = vmatprep.subr.mxu0 0.0
    %258 = vmatpush1.msra.mxu0 %v234
    %259 = vmatprep.subr.mxu0 0.0
    %260 = vmatpush1.msra.mxu0 %v235
    %261 = vmatprep.subr.mxu0 0.0
    %262 = vmatpush1.msra.mxu0 %v236
    %263 = vmatprep.subr.mxu0 0.0
    %264 = vmatpush1.msra.mxu0 %v237
    %265 = vmatprep.subr.mxu0 0.0
    %266 = vmatpush1.msra.mxu0 %v238
    %267 = vmatprep.subr.mxu0 0.0
    %268 = vmatpush1.msra.mxu0 %v239
    %269 = vmatprep.subr.mxu0 0.0
    %270 = vmatpush1.msra.mxu0 %v240
    %271 = vmatprep.subr.mxu0 0.0
    %272 = vmatpush1.msra.mxu0 %v241
    %273 = vmatprep.subr.mxu0 0.0
    %274 = vmatpush1.msra.mxu0 %v242
    %275 = vmatprep.subr.mxu0 0.0
    %276 = vmatpush1.msra.mxu0 %v243
    %277 = vmatprep.subr.mxu0 0.0
    %278 = vmatpush1.msra.mxu0 %v244
    %279 = vmatprep.subr.mxu0 0.0
    %280 = vmatpush1.msra.mxu0 %v245
    %281 = vmatprep.subr.mxu0 0.0
    %282 = vmatpush1.msra.mxu0 %v246
    %283 = vmatprep.subr.mxu0 0.0
    %284 = vmatpush1.msra.mxu0 %v247
    %285 = vmatprep.subr.mxu0 0.0
    %286 = vmatpush1.msra.mxu0 %v248
    %287 = vmatprep.subr.mxu0 0.0
    %288 = vmatpush1.msra.mxu0 %v249
    %289 = vmatprep.subr.mxu0 0.0
    %290 = vmatpush1.msra.mxu0 0.0
    %291 = vmatprep.subr.mxu0 0.0
    %292 = vmatpush1.msra.mxu0 0.0
    %293 = vmatprep.subr.mxu0 0.0
    %294 = vmatpush1.msra.mxu0 0.0
    %295 = vmatprep.subr.mxu0 0.0
    %296 = vmatpush1.msra.mxu0 0.0
    %297 = vmatprep.subr.mxu0 0.0
    %298 = vmatpush1.msra.mxu0 0.0
    %299 = vmatprep.subr.mxu0 0.0
    %300 = vmatpush1.msra.mxu0 0.0
    %301 = vmatprep.subr.mxu0 0.0
    %302 = vmatpush1.msra.mxu0 0.0
    %303 = vmatprep.subr.mxu0 0.0
    %304 = vmatpush1.msra.mxu0 0.0
    %305 = vmatprep.subr.mxu0 0.0
    %306 = vmatpush1.msra.mxu0 0.0
    %307 = vmatprep.subr.mxu0 0.0
    %308 = vmatpush1.msra.mxu0 0.0
    %309 = vmatprep.subr.mxu0 0.0
    %310 = vmatpush1.msra.mxu0 0.0
    %311 = vmatprep.subr.mxu0 0.0
    %312 = vmatpush1.msra.mxu0 0.0
    %313 = vmatprep.subr.mxu0 0.0
    %314 = vmatpush1.msra.mxu0 0.0
    %315 = vmatprep.subr.mxu0 0.0
    %316 = vmatpush1.msra.mxu0 0.0
    %317 = vmatprep.subr.mxu0 0.0
    %318 = vmatpush1.msra.mxu0 0.0
    %319 = vmatprep.subr.mxu0 0.0
    %320 = vmatpush1.msra.mxu0 0.0
    %321 = vmatprep.mubr.f32.mxu0 0.0
    %322 = vmatmul.mubr.f32.gmra.mrb[0].mxu0 %v232
    %v323 = vpop.f32.mrb[0].mxu0
    %v324 = vadd.f32 %v255, %v323
    %v325 = vpop.f32.mrb[0].mxu0
    %326 = vmatprep.mubr.f32.mxu0 0.0
    %327 = vmatmul.mubr.f32.gmra.mrb[0].mxu0 %v233
    %v328 = vpop.f32.mrb[0].mxu0
    %v329 = vadd.f32 %v255, %v328
    %v330 = vpop.f32.mrb[0].mxu0
    %331 = vdwg.mxu0
    %332 = vst [vmem:[#allocation10] sm:$0xff] %v324
    %333 = vst [vmem:[#allocation10 + $0x8] sm:$0xff] %v329
    %vm334 = vcmp.ge.s32.totalorder %v186, 0
    %vm335 = vcmp.lt.s32.totalorder %v186, 8
    %vm336 = vmand %vm334, %vm335
    %v337 = vsel %vm336, 1, 0
    %vm338 = vcmp.eq.s32.totalorder %v337, 1
    %v339 = vsel %vm338, %v324, -inf
    %v340 = vsel %vm338, %v329, -inf
    %341 = vmax.xlane.f32.xlu0 %v339
    %v342 = vpop.xlane.xlu0 %341
    %343 = vmax.xlane.f32.xlu0 %v340
    %v344 = vpop.xlane.xlu0 %343
    %v345 = vsel %vm338, %v342, 0.0
    %v346 = vsel %vm338, %v344, 0.0
    %vm347 = vcmp.ge.s32.totalorder %v186, 8
    %vm348 = vcmp.lt.s32.totalorder %v186, 16
    %vm349 = vmand %vm347, %vm348
    %v350 = vsel %vm349, 1, 0
    %vm351 = vcmp.eq.s32.totalorder %v350, 1
    %v352 = vsel %vm351, %v324, -inf
    %v353 = vsel %vm351, %v329, -inf
    %354 = vmax.xlane.f32.xlu0 %v352
    %v355 = vpop.xlane.xlu0 %354
    %356 = vmax.xlane.f32.xlu0 %v353
    %v357 = vpop.xlane.xlu0 %356
    %v358 = vsel %vm351, %v355, %v345
    %v359 = vsel %vm351, %v357, %v346
    %v360 = vsub.f32 %v324, %v358
    %v361 = vsub.f32 %v329, %v359
    %v362 = vmul.f32 %v360, 1.442695
    %v363 = vpow.pop %v362
    %v364 = vmul.f32 %v361, 1.442695
    %v365 = vpow.pop %v364
    %v366 = vsel %vm338, %v363, 0.0
    %v367 = vsel %vm338, %v365, 0.0
    %368 = vadd.xlane.f32.xlu0 %v366
    %v369 = vpop.xlane.xlu0 %368
    %370 = vadd.xlane.f32.xlu0 %v367
    %v371 = vpop.xlane.xlu0 %370
    %v372 = vrcp.pop %v369
    %v373 = vmul.f32 1.0, %v372
    %v374 = vrcp.pop %v371
    %v375 = vmul.f32 1.0, %v374
    %v376 = vsel %vm338, %v373, 0.0
    %v377 = vsel %vm338, %v375, 0.0
    %v378 = vlog2.pop %v369
    %v379 = vmul.f32 %v378, 0.6931472
    %v380 = vlog2.pop %v371
    %v381 = vmul.f32 %v380, 0.6931472
    %v382 = vadd.f32 %v342, %v379
    %v383 = vadd.f32 %v344, %v381
    %v384 = vsel %vm338, %v382, 0.0
    %v385 = vsel %vm338, %v383, 0.0
    %v386 = vsel %vm351, %v363, 0.0
    %v387 = vsel %vm351, %v365, 0.0
    %388 = vadd.xlane.f32.xlu0 %v386
    %v389 = vpop.xlane.xlu0 %388
    %390 = vadd.xlane.f32.xlu0 %v387
    %v391 = vpop.xlane.xlu0 %390
    %v392 = vrcp.pop %v389
    %v393 = vmul.f32 1.0, %v392
    %v394 = vrcp.pop %v391
    %v395 = vmul.f32 1.0, %v394
    %v396 = vsel %vm351, %v393, %v376
    %v397 = vsel %vm351, %v395, %v377
    %v398 = vlog2.pop %v389
    %v399 = vmul.f32 %v398, 0.6931472
    %v400 = vlog2.pop %v391
    %v401 = vmul.f32 %v400, 0.6931472
    %v402 = vadd.f32 %v355, %v399
    %v403 = vadd.f32 %v357, %v401
    %v404 = vsel %vm351, %v402, %v384
    %v405 = vsel %vm351, %v403, %v385
    %v406 = vmul.f32 %v363, %v396
    %v407 = vmul.f32 %v365, %v397
    %v408 = vsub.f32 %v324, %v404
    %v409 = vsub.f32 %v329, %v405
    %v410 = vmul.f32 %v406, %v408
    %v411 = vmul.f32 %v407, %v409
    %412 = vadd.xlane.f32.xlu0 %v410
    %v413 = vpop.xlane.xlu0 %412
    %414 = vadd.xlane.f32.xlu0 %v411
    %v415 = vpop.xlane.xlu0 %414
    %v416 = vld [vmem:[#allocation8] sm:$0xff]
    %v417 = vld [vmem:[#allocation8 + $0x8] sm:$0xff]
    %v418 = vld [vmem:[#allocation8 + $0x10] sm:$0xff]
    %v419 = vld [vmem:[#allocation8 + $0x18] sm:$0xff]
    %v420 = vld [vmem:[#allocation8 + $0x20] sm:$0xff]
    %v421 = vld [vmem:[#allocation8 + $0x28] sm:$0xff]
    %v422 = vld [vmem:[#allocation8 + $0x30] sm:$0xff]
    %v423 = vld [vmem:[#allocation8 + $0x38] sm:$0xff]
    %v424 = vld [vmem:[#allocation8 + $0x40] sm:$0xff]
    %v425 = vld [vmem:[#allocation8 + $0x48] sm:$0xff]
    %v426 = vld [vmem:[#allocation8 + $0x50] sm:$0xff]
    %v427 = vld [vmem:[#allocation8 + $0x58] sm:$0xff]
    %v428 = vld [vmem:[#allocation8 + $0x60] sm:$0xff]
    %v429 = vld [vmem:[#allocation8 + $0x68] sm:$0xff]
    %v430 = vld [vmem:[#allocation8 + $0x70] sm:$0xff]
    %v431 = vld [vmem:[#allocation8 + $0x78] sm:$0xff]
    %432 = vmatprep.subr.mxu0 0.0
    %433 = vmatpush1.msra.mxu0 %v416
    %434 = vmatprep.subr.mxu0 0.0
    %435 = vmatpush1.msra.mxu0 %v417
    %436 = vmatprep.subr.mxu0 0.0
    %437 = vmatpush1.msra.mxu0 %v418
    %438 = vmatprep.subr.mxu0 0.0
    %439 = vmatpush1.msra.mxu0 %v419
    %440 = vmatprep.subr.mxu0 0.0
    %441 = vmatpush1.msra.mxu0 %v420
    %442 = vmatprep.subr.mxu0 0.0
    %443 = vmatpush1.msra.mxu0 %v421
    %444 = vmatprep.subr.mxu0 0.0
    %445 = vmatpush1.msra.mxu0 %v422
    %446 = vmatprep.subr.mxu0 0.0
    %447 = vmatpush1.msra.mxu0 %v423
    %448 = vmatprep.subr.mxu0 0.0
    %449 = vmatpush1.msra.mxu0 %v424
    %450 = vmatprep.subr.mxu0 0.0
    %451 = vmatpush1.msra.mxu0 %v425
    %452 = vmatprep.subr.mxu0 0.0
    %453 = vmatpush1.msra.mxu0 %v426
    %454 = vmatprep.subr.mxu0 0.0
    %455 = vmatpush1.msra.mxu0 %v427
    %456 = vmatprep.subr.mxu0 0.0
    %457 = vmatpush1.msra.mxu0 %v428
    %458 = vmatprep.subr.mxu0 0.0
    %459 = vmatpush1.msra.mxu0 %v429
    %460 = vmatprep.subr.mxu0 0.0
    %461 = vmatpush1.msra.mxu0 %v430
    %462 = vmatprep.subr.mxu0 0.0
    %463 = vmatpush1.msra.mxu0 %v431
    %464 = vmatprep.subr.mxu0 0.0
    %465 = vmatpush1.msra.mxu0 0.0
    %466 = vmatprep.subr.mxu0 0.0
    %467 = vmatpush1.msra.mxu0 0.0
    %468 = vmatprep.subr.mxu0 0.0
    %469 = vmatpush1.msra.mxu0 0.0
    %470 = vmatprep.subr.mxu0 0.0
    %471 = vmatpush1.msra.mxu0 0.0
    %472 = vmatprep.subr.mxu0 0.0
    %473 = vmatpush1.msra.mxu0 0.0
    %474 = vmatprep.subr.mxu0 0.0
    %475 = vmatpush1.msra.mxu0 0.0
    %476 = vmatprep.subr.mxu0 0.0
    %477 = vmatpush1.msra.mxu0 0.0
    %478 = vmatprep.subr.mxu0 0.0
    %479 = vmatpush1.msra.mxu0 0.0
    %480 = vmatprep.subr.mxu0 0.0
    %481 = vmatpush1.msra.mxu0 0.0
    %482 = vmatprep.subr.mxu0 0.0
    %483 = vmatpush1.msra.mxu0 0.0
    %484 = vmatprep.subr.mxu0 0.0
    %485 = vmatpush1.msra.mxu0 0.0
    %486 = vmatprep.subr.mxu0 0.0
    %487 = vmatpush1.msra.mxu0 0.0
    %488 = vmatprep.subr.mxu0 0.0
    %489 = vmatpush1.msra.mxu0 0.0
    %490 = vmatprep.subr.mxu0 0.0
    %491 = vmatpush1.msra.mxu0 0.0
    %492 = vmatprep.subr.mxu0 0.0
    %493 = vmatpush1.msra.mxu0 0.0
    %494 = vmatprep.subr.mxu0 0.0
    %495 = vmatpush1.msra.mxu0 0.0
    %496 = vmatprep.mubr.f32.mxu0 0.0
    %497 = vmatmul.mubr.f32.gmra.mrb[0].mxu0 %v406
    %v498 = vpop.f32.mrb[0].mxu0
    %v499 = vadd.f32 0.0, %v498
    %v500 = vpop.f32.mrb[0].mxu0
    %501 = vmatprep.mubr.f32.mxu0 0.0
    %502 = vmatmul.mubr.f32.gmra.mrb[0].mxu0 %v407
    %v503 = vpop.f32.mrb[0].mxu0
    %v504 = vadd.f32 0.0, %v503
    %v505 = vpop.f32.mrb[0].mxu0
    %506 = vdwg.mxu0
    %v507 = vsub.f32 %v413, %v499
    %v508 = vsub.f32 %v415, %v504
    %509 = vmin.xlane.f32.xlu0 %v507
    %v510 = vpop.xlane.xlu0 %509
    %511 = vmin.xlane.f32.xlu0 %v508
    %v512 = vpop.xlane.xlu0 %511
    %vm513 = vcmp.eq.f32.partialorder %v507, %v510
    %vm514 = vcmp.eq.f32.partialorder %v508, %v512
    %v515 = vsel %vm513, %v186, 128
    %v516 = vsel %vm514, %v186, 128
    %v517 = vand.u32 %v515, 65535
    %v518 = vshra.s32 %v515, 16
    %v519 = vcvt.s32.f32 %v517
    %v520 = vcvt.s32.f32 %v518
    %521 = vmin.xlane.f32.xlu0 %v520
    %v522 = vpop.xlane.xlu0 %521
    %vm523 = vcmp.eq.f32.partialorder %v520, %v522
    %v524 = vsel %vm523, %v519, inf
    %525 = vmin.xlane.f32.xlu0 %v524
    %v526 = vpop.xlane.xlu0 %525
    %v527 = vcvt.f32.s32 %v526
    %v528 = vcvt.f32.s32 %v522
    %v529 = vshll.u32 %v528, 16
    %v530 = vadd.s32 %v529, %v527
    %v531 = vand.u32 %v516, 65535
    %v532 = vshra.s32 %v516, 16
    %v533 = vcvt.s32.f32 %v531
    %v534 = vcvt.s32.f32 %v532
    %535 = vmin.xlane.f32.xlu0 %v534
    %v536 = vpop.xlane.xlu0 %535
    %vm537 = vcmp.eq.f32.partialorder %v534, %v536
    %v538 = vsel %vm537, %v533, inf
    %539 = vmin.xlane.f32.xlu0 %v538
    %v540 = vpop.xlane.xlu0 %539
    %v541 = vcvt.f32.s32 %v540
    %v542 = vcvt.f32.s32 %v536
    %v543 = vshll.u32 %v542, 16
    %v544 = vadd.s32 %v543, %v541
    %vm545 = vcmp.eq.s32.totalorder %v186, %v530
    %vm546 = vcmp.eq.s32.totalorder %v186, %v544
    %v547 = vsel %vm545, 1, 0
    %v548 = vsel %vm546, 1, 0
    %v549 = vcvt.s32.f32 %v547
    %v550 = vcvt.s32.f32 %v548
    %v551 = vld [vmem:[#allocation7] sm:$0xff]
    %v552 = vld [vmem:[#allocation7 + $0x8] sm:$0xff]
    %v553 = vld [vmem:[#allocation7 + $0x10] sm:$0xff]
    %v554 = vld [vmem:[#allocation7 + $0x18] sm:$0xff]
    %v555 = vld [vmem:[#allocation7 + $0x20] sm:$0xff]
    %v556 = vld [vmem:[#allocation7 + $0x28] sm:$0xff]
    %v557 = vld [vmem:[#allocation7 + $0x30] sm:$0xff]
    %v558 = vld [vmem:[#allocation7 + $0x38] sm:$0xff]
    %v559 = vld [vmem:[#allocation7 + $0x40] sm:$0xff]
    %v560 = vld [vmem:[#allocation7 + $0x48] sm:$0xff]
    %v561 = vld [vmem:[#allocation7 + $0x50] sm:$0xff]
    %v562 = vld [vmem:[#allocation7 + $0x58] sm:$0xff]
    %v563 = vld [vmem:[#allocation7 + $0x60] sm:$0xff]
    %v564 = vld [vmem:[#allocation7 + $0x68] sm:$0xff]
    %v565 = vld [vmem:[#allocation7 + $0x70] sm:$0xff]
    %v566 = vld [vmem:[#allocation7 + $0x78] sm:$0xff]
    %567 = vmatprep.subr.mxu0 0.0
    %568 = vmatpush1.msra.mxu0 %v551
    %569 = vmatprep.subr.mxu0 0.0
    %570 = vmatpush1.msra.mxu0 %v552
    %571 = vmatprep.subr.mxu0 0.0
    %572 = vmatpush1.msra.mxu0 %v553
    %573 = vmatprep.subr.mxu0 0.0
    %574 = vmatpush1.msra.mxu0 %v554
    %575 = vmatprep.subr.mxu0 0.0
    %576 = vmatpush1.msra.mxu0 %v555
    %577 = vmatprep.subr.mxu0 0.0
    %578 = vmatpush1.msra.mxu0 %v556
    %579 = vmatprep.subr.mxu0 0.0
    %580 = vmatpush1.msra.mxu0 %v557
    %581 = vmatprep.subr.mxu0 0.0
    %582 = vmatpush1.msra.mxu0 %v558
    %583 = vmatprep.subr.mxu0 0.0
    %584 = vmatpush1.msra.mxu0 %v559
    %585 = vmatprep.subr.mxu0 0.0
    %586 = vmatpush1.msra.mxu0 %v560
    %587 = vmatprep.subr.mxu0 0.0
    %588 = vmatpush1.msra.mxu0 %v561
    %589 = vmatprep.subr.mxu0 0.0
    %590 = vmatpush1.msra.mxu0 %v562
    %591 = vmatprep.subr.mxu0 0.0
    %592 = vmatpush1.msra.mxu0 %v563
    %593 = vmatprep.subr.mxu0 0.0
    %594 = vmatpush1.msra.mxu0 %v564
    %595 = vmatprep.subr.mxu0 0.0
    %596 = vmatpush1.msra.mxu0 %v565
    %597 = vmatprep.subr.mxu0 0.0
    %598 = vmatpush1.msra.mxu0 %v566
    %599 = vmatprep.subr.mxu0 0.0
    %600 = vmatpush1.msra.mxu0 0.0
    %601 = vmatprep.subr.mxu0 0.0
    %602 = vmatpush1.msra.mxu0 0.0
    %603 = vmatprep.subr.mxu0 0.0
    %604 = vmatpush1.msra.mxu0 0.0
    %605 = vmatprep.subr.mxu0 0.0
    %606 = vmatpush1.msra.mxu0 0.0
    %607 = vmatprep.subr.mxu0 0.0
    %608 = vmatpush1.msra.mxu0 0.0
    %609 = vmatprep.subr.mxu0 0.0
    %610 = vmatpush1.msra.mxu0 0.0
    %611 = vmatprep.subr.mxu0 0.0
    %612 = vmatpush1.msra.mxu0 0.0
    %613 = vmatprep.subr.mxu0 0.0
    %614 = vmatpush1.msra.mxu0 0.0
    %615 = vmatprep.subr.mxu0 0.0
    %616 = vmatpush1.msra.mxu0 0.0
    %617 = vmatprep.subr.mxu0 0.0
    %618 = vmatpush1.msra.mxu0 0.0
    %619 = vmatprep.subr.mxu0 0.0
    %620 = vmatpush1.msra.mxu0 0.0
    %621 = vmatprep.subr.mxu0 0.0
    %622 = vmatpush1.msra.mxu0 0.0
    %623 = vmatprep.subr.mxu0 0.0
    %624 = vmatpush1.msra.mxu0 0.0
    %625 = vmatprep.subr.mxu0 0.0
    %626 = vmatpush1.msra.mxu0 0.0
    %627 = vmatprep.subr.mxu0 0.0
    %628 = vmatpush1.msra.mxu0 0.0
    %629 = vmatprep.subr.mxu0 0.0
    %630 = vmatpush1.msra.mxu0 0.0
    %631 = vmatprep.mubr.f32.mxu0 0.0
    %632 = vmatmul.mubr.f32.gmra.mrb[0].mxu0 %v549
    %v633 = vpop.f32.mrb[0].mxu0
    %v634 = vadd.f32 0.0, %v633
    %v635 = vpop.f32.mrb[0].mxu0
    %636 = vmatprep.mubr.f32.mxu0 0.0
    %637 = vmatmul.mubr.f32.gmra.mrb[0].mxu0 %v550
    %v638 = vpop.f32.mrb[0].mxu0
    %v639 = vadd.f32 0.0, %v638
    %v640 = vpop.f32.mrb[0].mxu0
    %641 = vdwg.mxu0
    %642 = vst [vmem:[#allocation11] sm:$0xff] %v634
    %643 = vst [vmem:[#allocation11 + $0x8] sm:$0xff] %v639
    %v644 = vld [vmem:[%s1] sm:$0xff]
    %v645 = vld [vmem:[%s1 + $0x8] sm:$0xff]
    %v646 = vmul.f32 %v510, %v644
    %v647 = vmul.f32 %v512, %v645
    %vm648 = vcmask 7168
    %649 = vst.msk [vmem:[%s11] sm:$0xff] %vm648, %v646
    %650 = vst.msk [vmem:[%s11 + $0x8] sm:$0xff] %vm648, %v647
    // Predicated region
    $region54: #{tpu_custom_call.1} parent=1 // pred_check
      _
    $region55: #{tpu_custom_call.1} parent=1 // pred_check_branch
      %652 = sbr.rel (0) target = $region57
    $region56: #{tpu_custom_call.1} parent=1 // pred_region
      %s654 = ssub.s32 256, 256
      %655 = vsyncadd [#allocation4], %s654
      %s656 = sshll.u32 [#allocation10], 4
      %s657 = int_to_ptr.vmem [resolvable:$true] %s656
      %662 = dma.vmem_to_hbm [thread:$0]  %s657, 256, %s9, [#allocation4], 128, 128, 8
    $region57: #{tpu_custom_call.1} parent=1 // pred_fallthru
      _
    // Predicated region
    $region58: #{tpu_custom_call.1} parent=1 // pred_check
      _
    $region59: #{tpu_custom_call.1} parent=1 // pred_check_branch
      %664 = sbr.rel (0) target = $region61
    $region60: #{tpu_custom_call.1} parent=1 // pred_region
      %s666 = ssub.s32 256, 256
      %667 = vsyncadd [#allocation12], %s666
      %s668 = sshll.u32 [#allocation11], 4
      %s669 = int_to_ptr.vmem [resolvable:$true] %s668
      %674 = dma.vmem_to_hbm [thread:$0]  %s669, 256, %s10, [#allocation12], 128, 128, 8
    $region61: #{tpu_custom_call.1} parent=1 // pred_fallthru
      _
    // Predicated region
    $region62: #{tpu_custom_call.1} parent=1 // pred_check
      _
    $region63: #{tpu_custom_call.1} parent=1 // pred_check_branch
      %676 = sbr.rel (0) target = $region65
    $region64: #{tpu_custom_call.1} parent=1 // pred_region
      _
    $region65: #{tpu_custom_call.1} parent=1 // pred_fallthru
      _
    // Predicated region
    $region66: #{tpu_custom_call.1} parent=1 // pred_check
      _
    $region67: #{tpu_custom_call.1} parent=1 // pred_check_branch
      %678 = sbr.rel (0) target = $region69
    $region68: #{tpu_custom_call.1} parent=1 // pred_region
      %679 = dma.done [#allocation4], 256
    $region69: #{tpu_custom_call.1} parent=1 // pred_fallthru
      _
    // Predicated region
    $region70: #{tpu_custom_call.1} parent=1 // pred_check
      _
    $region71: #{tpu_custom_call.1} parent=1 // pred_check_branch
      %681 = sbr.rel (0) target = $region73
    $region72: #{tpu_custom_call.1} parent=1 // pred_region
      %682 = dma.done [#allocation12], 256
    $region73: #{tpu_custom_call.1} parent=1 // pred_fallthru
      _
    // Predicated region
    $region74: #{tpu_custom_call.1} parent=1 // pred_check
      _
    $region75: #{tpu_custom_call.1} parent=1 // pred_check_branch
      %684 = sbr.rel (0) target = $region77
    $region76: #{tpu_custom_call.1} parent=1 // pred_region
      _
    $region77: #{tpu_custom_call.1} parent=1 // pred_fallthru
      _
    %685 = vsyncpa [#allocation3], 1
    %686 = vsyncpa [#allocation6], 1
    %687 = vsyncpa [#allocation9], 1
    %688 = vsyncpa [#allocation4], 1
    %689 = vsyncpa [#allocation12], 1

</llo_original>
